<compile_context>
chip_gen: v5e
topology: v5e:2x2
jax: 0.10.0
libtpu: 0.0.40
codegen_flags: <defaults>
</compile_context>

<pallas_src>
import random

import jax
import jax.numpy as jnp
from jax.experimental import pallas as pl
from jax.experimental.pallas import tpu as pltpu

LANE = 128           # TPU lane width: pad feature dims to this for dense tiles.
MAX_MIDDLE = 3       # random.randint(0, 3) upper bound in the module.


# ----------------------------------------------------------------------------
# Fused kernel
# ----------------------------------------------------------------------------
def _dynamic_net_kernel(n_ref, x_ref, w_in_ref, b_in_ref, w_out_ref, b_out_ref,
                        o_ref):
    """Fused DynamicNet forward; all operands resident in VMEM.

        h = relu(x @ w_in + b_in)
        for i in range(MAX_MIDDLE):                 # statically unrolled
            h = where(i < n, relu(h @ w_out + b_out), h)
        y = h @ w_out + b_out
    """
    n = n_ref[0]                     # runtime loop count, scalar in SMEM
    # Hoist the reused weights: loaded once, shared by all middle layers + epilogue.
    w_out = w_out_ref[...]
    b_out = b_out_ref[...]

    h = jnp.dot(x_ref[...], w_in_ref[...], preferred_element_type=jnp.float32)
    h = jnp.maximum(h + b_in_ref[...], 0.0)

    # Unrolled, predicated middle layers: straight-line code for the LLO
    # scheduler; exact math for active iterations, identity for inactive ones.
    for i in range(MAX_MIDDLE):
        hh = jnp.dot(h, w_out, preferred_element_type=jnp.float32) + b_out
        hh = jnp.maximum(hh, 0.0)
        h = jnp.where(i < n, hh, h)

    y = jnp.dot(h, w_out, preferred_element_type=jnp.float32) + b_out
    o_ref[...] = y.astype(o_ref.dtype)


def _fused_forward_call(n_arr, x_p, w_in_p, b_in_p, w_out_p, b_out_p):
    """Single pallas_call: scalar loop count in SMEM, tensors in VMEM."""
    N, P = x_p.shape
    n_layers = 1 + MAX_MIDDLE + 1
    cost = pl.CostEstimate(
        flops=2 * N * P * P * n_layers,
        transcendentals=0,
        bytes_accessed=4 * (x_p.size + w_in_p.size + b_in_p.size
                            + w_out_p.size + b_out_p.size + N * P),
    )
    return pl.pallas_call(
        _dynamic_net_kernel,
        out_shape=jax.ShapeDtypeStruct((N, P), jnp.float32),
        in_specs=[
            pl.BlockSpec(memory_space=pltpu.MemorySpace.SMEM),   # n_middle_iters
            pl.BlockSpec(memory_space=pltpu.MemorySpace.VMEM),   # x (padded)
            pl.BlockSpec(memory_space=pltpu.MemorySpace.VMEM),   # w_in (padded)
            pl.BlockSpec(memory_space=pltpu.MemorySpace.VMEM),   # b_in (padded)
            pl.BlockSpec(memory_space=pltpu.MemorySpace.VMEM),   # w_out (padded)
            pl.BlockSpec(memory_space=pltpu.MemorySpace.VMEM),   # b_out (padded)
        ],
        out_specs=pl.BlockSpec(memory_space=pltpu.MemorySpace.VMEM),
        cost_estimate=cost,
    )(n_arr, x_p, w_in_p, b_in_p, w_out_p, b_out_p)


# ----------------------------------------------------------------------------
# Host-side wrapper
# ----------------------------------------------------------------------------
def _pad2(a, rows, cols):
    r, c = a.shape
    return jnp.pad(a, ((0, rows - r), (0, cols - c)))


def init_linear_params(key, in_dim, out_dim, dtype=jnp.float32):
    """PyTorch-style nn.Linear init: U(-1/sqrt(in), 1/sqrt(in)).

    Weight stored as (in_dim, out_dim) (transpose of torch's (out, in)) so the
    kernel does a plain x @ W + b on the MXU; bias is (1, out_dim)."""
    kw, kb = jax.random.split(key)
    bound = 1.0 / (in_dim ** 0.5)
    w = jax.random.uniform(kw, (in_dim, out_dim), dtype, -bound, bound)
    b = jax.random.uniform(kb, (1, out_dim), dtype, -bound, bound)
    return w, b


def make_dynamic_net(params, D_in, H, D_out):
    """Pads params to 128 lanes once and returns a jitted forward(x, k)."""
    assert H == D_out, "forward reuses output_linear in the loop => H == D_out"
    w_in, b_in = params["input_linear"]
    w_out, b_out = params["output_linear"]

    # Zero-padding is exact: padded lanes stay 0 through matmul/bias/ReLU.
    w_in_p = _pad2(w_in, LANE, LANE)
    b_in_p = _pad2(b_in, 1, LANE)
    w_out_p = _pad2(w_out, LANE, LANE)
    b_out_p = _pad2(b_out, 1, LANE)

    @jax.jit
    def forward(x, n_middle_iters):
        x_p = _pad2(x, x.shape[0], LANE)
        n_arr = jnp.asarray(n_middle_iters, jnp.int32).reshape(1)
        y_p = _fused_forward_call(n_arr, x_p, w_in_p, b_in_p, w_out_p, b_out_p)
        return y_p[:, :D_out]

    return forward


def reference_forward(x, params, n_middle_iters):
    w_in, b_in = params["input_linear"]
    w_out, b_out = params["output_linear"]
    h = jnp.maximum(x @ w_in + b_in, 0.0)
    for _ in range(int(n_middle_iters)):
        h = jnp.maximum(h @ w_out + b_out, 0.0)
    return h @ w_out + b_out


if __name__ == "__main__":
    # Small shapes consistent with the module: N=8, D_in=16, H=D_out=32.
    N, D_in, H, D_out = 8, 16, 32, 32

    key = jax.random.PRNGKey(0)
    k_x, k_in, k_mid, k_out = jax.random.split(key, 4)

    x = jax.random.normal(k_x, (N, D_in), dtype=jnp.float32)

    params = {
        "input_linear": init_linear_params(k_in, D_in, H),
        # middle_linear is defined in __init__ but unused in forward
        # (kept for parity with the PyTorch module).
        "middle_linear": init_linear_params(k_mid, H, H),
        "output_linear": init_linear_params(k_out, H, D_out),
    }

    forward = make_dynamic_net(params, D_in, H, D_out)

    # One compiled fused kernel handles every possible loop count k = 0..3.
    for k in range(MAX_MIDDLE + 1):
        y = jax.block_until_ready(forward(x, k))
        y_ref = reference_forward(x, params, k)
        assert y.shape == (N, D_out)
        assert jnp.allclose(y, y_ref, atol=1e-5, rtol=1e-5), f"mismatch at k={k}"

    # The module's actual forward draws k = random.randint(0, 3) per call.
    random.seed(0)
    k = random.randint(0, MAX_MIDDLE)
    y = jax.block_until_ready(forward(x, k))
    assert jnp.allclose(y, reference_forward(x, params, k), atol=1e-5, rtol=1e-5)

    print("KERNEL_OK")
</pallas_src>

<mosaic_0001>
module attributes {stable_mosaic.version = 11 : i64} {
  func.func @_dynamic_net_kernel(%arg0: memref<1xi32, #tpu.memory_space<smem>>, %arg1: memref<8x128xf32, #tpu.memory_space<vmem>>, %arg2: memref<128x128xf32, #tpu.memory_space<vmem>>, %arg3: memref<1x128xf32, #tpu.memory_space<vmem>>, %arg4: memref<128x128xf32, #tpu.memory_space<vmem>>, %arg5: memref<1x128xf32, #tpu.memory_space<vmem>>, %arg6: memref<8x128xf32, #tpu.memory_space<vmem>>) attributes {dimension_semantics = [], scalar_prefetch = 0 : i64, scratch_operands = 0 : i64, tpu.core_type = #tpu.core_type<tc>} {
    %c0 = arith.constant 0 : index
    %0 = memref.load %arg0[%c0] : memref<1xi32, #tpu.memory_space<smem>>
    %c0_0 = arith.constant 0 : index
    %c0_1 = arith.constant 0 : index
    %1 = vector.load %arg4[%c0_0, %c0_1] : memref<128x128xf32, #tpu.memory_space<vmem>>, vector<128x128xf32>
    %c0_2 = arith.constant 0 : index
    %c0_3 = arith.constant 0 : index
    %2 = vector.load %arg5[%c0_2, %c0_3] : memref<1x128xf32, #tpu.memory_space<vmem>>, vector<1x128xf32>
    %c0_4 = arith.constant 0 : index
    %c0_5 = arith.constant 0 : index
    %3 = vector.load %arg1[%c0_4, %c0_5] : memref<8x128xf32, #tpu.memory_space<vmem>>, vector<8x128xf32>
    %c0_6 = arith.constant 0 : index
    %c0_7 = arith.constant 0 : index
    %4 = vector.load %arg2[%c0_6, %c0_7] : memref<128x128xf32, #tpu.memory_space<vmem>>, vector<128x128xf32>
    %cst = arith.constant dense<0.000000e+00> : vector<8x128xf32>
    %5 = tpu.matmul %3, %4, %cst {dimension_numbers = #tpu.dot_dimension_numbers<[1], [0], [0], [1], [0, 0, 1, 1], [], []>} : vector<8x128xf32>, vector<128x128xf32>, vector<8x128xf32> -> vector<8x128xf32>
    %c0_8 = arith.constant 0 : index
    %c0_9 = arith.constant 0 : index
    %6 = vector.load %arg3[%c0_8, %c0_9] : memref<1x128xf32, #tpu.memory_space<vmem>>, vector<1x128xf32>
    %7 = vector.broadcast %6 : vector<1x128xf32> to vector<8x128xf32>
    %8 = arith.addf %5, %7 : vector<8x128xf32>
    %cst_10 = arith.constant 0.000000e+00 : f32
    %9 = vector.broadcast %cst_10 : f32 to vector<8x128xf32>
    %10 = arith.maximumf %8, %9 : vector<8x128xf32>
    %cst_11 = arith.constant dense<0.000000e+00> : vector<8x128xf32>
    %11 = tpu.matmul %10, %1, %cst_11 {dimension_numbers = #tpu.dot_dimension_numbers<[1], [0], [0], [1], [0, 0, 1, 1], [], []>} : vector<8x128xf32>, vector<128x128xf32>, vector<8x128xf32> -> vector<8x128xf32>
    %12 = vector.broadcast %2 : vector<1x128xf32> to vector<8x128xf32>
    %13 = arith.addf %11, %12 : vector<8x128xf32>
    %cst_12 = arith.constant 0.000000e+00 : f32
    %14 = vector.broadcast %cst_12 : f32 to vector<8x128xf32>
    %15 = arith.maximumf %13, %14 : vector<8x128xf32>
    %c0_i32 = arith.constant 0 : i32
    %16 = arith.cmpi sgt, %0, %c0_i32 : i32
    %17 = arith.select %16, %15, %10 : vector<8x128xf32>
    %cst_13 = arith.constant dense<0.000000e+00> : vector<8x128xf32>
    %18 = tpu.matmul %17, %1, %cst_13 {dimension_numbers = #tpu.dot_dimension_numbers<[1], [0], [0], [1], [0, 0, 1, 1], [], []>} : vector<8x128xf32>, vector<128x128xf32>, vector<8x128xf32> -> vector<8x128xf32>
    %19 = vector.broadcast %2 : vector<1x128xf32> to vector<8x128xf32>
    %20 = arith.addf %18, %19 : vector<8x128xf32>
    %cst_14 = arith.constant 0.000000e+00 : f32
    %21 = vector.broadcast %cst_14 : f32 to vector<8x128xf32>
    %22 = arith.maximumf %20, %21 : vector<8x128xf32>
    %c1_i32 = arith.constant 1 : i32
    %23 = arith.cmpi sgt, %0, %c1_i32 : i32
    %24 = arith.select %23, %22, %17 : vector<8x128xf32>
    %cst_15 = arith.constant dense<0.000000e+00> : vector<8x128xf32>
    %25 = tpu.matmul %24, %1, %cst_15 {dimension_numbers = #tpu.dot_dimension_numbers<[1], [0], [0], [1], [0, 0, 1, 1], [], []>} : vector<8x128xf32>, vector<128x128xf32>, vector<8x128xf32> -> vector<8x128xf32>
    %26 = vector.broadcast %2 : vector<1x128xf32> to vector<8x128xf32>
    %27 = arith.addf %25, %26 : vector<8x128xf32>
    %cst_16 = arith.constant 0.000000e+00 : f32
    %28 = vector.broadcast %cst_16 : f32 to vector<8x128xf32>
    %29 = arith.maximumf %27, %28 : vector<8x128xf32>
    %c2_i32 = arith.constant 2 : i32
    %30 = arith.cmpi sgt, %0, %c2_i32 : i32
    %31 = arith.select %30, %29, %24 : vector<8x128xf32>
    %cst_17 = arith.constant dense<0.000000e+00> : vector<8x128xf32>
    %32 = tpu.matmul %31, %1, %cst_17 {dimension_numbers = #tpu.dot_dimension_numbers<[1], [0], [0], [1], [0, 0, 1, 1], [], []>} : vector<8x128xf32>, vector<128x128xf32>, vector<8x128xf32> -> vector<8x128xf32>
    %33 = vector.broadcast %2 : vector<1x128xf32> to vector<8x128xf32>
    %34 = arith.addf %32, %33 : vector<8x128xf32>
    %c0_18 = arith.constant 0 : index
    %c0_19 = arith.constant 0 : index
    %35 = vector.load %arg6[%c0_18, %c0_19] : memref<8x128xf32, #tpu.memory_space<vmem>>, vector<8x128xf32>
    tpu.vector_store %arg6[%c0_18, %c0_19], %34 {strides = array<i32>} : memref<8x128xf32, #tpu.memory_space<vmem>>, vector<8x128xf32>,
    return
  }
}

</mosaic_0001>

<llo_original>
// kernel: forward.1
$region0: #{forward.1}
  #allocation0 [shape = 'u32[]', space=smem, size = 0x4, offset = 0x4, fixed_abs, tag = 'smem constant byte address 0x4 - core index']
  #allocation1 [shape = 'u32[72,128]{1,0:T(1,128)}', space=vmem, size = 0x9000, scoped, tag = 'internal scratch']
  #allocation2 [shape = 's32[1]{0:T(128)S(6)}', space=smem, size = 0x200, scoped, tag = 'scoped memory for forward.1']
  %s0 = inlined_call_operand.<no memory space> [shape: s32[1], index: 0, kind: input, shape index: {}]
  %s1 = inlined_call_operand.vmem [shape: f32[8,128], index: 1, kind: input, shape index: {}]
  %s2 = inlined_call_operand.hbm [shape: f32[128,128], index: 2, kind: input, shape index: {}]
  %s3 = inlined_call_operand.vmem [shape: f32[1,128], index: 3, kind: input, shape index: {}]
  %s4 = inlined_call_operand.hbm [shape: f32[128,128], index: 4, kind: input, shape index: {}]
  %s5 = inlined_call_operand.vmem [shape: f32[1,128], index: 5, kind: input, shape index: {}]
  %s6 = inlined_call_operand.hbm [shape: f32[8,128], index: 6, kind: output, shape index: {}]
  %s7 = sld [smem:[#allocation0]]
  $region42: #{forward.1} parent=0
    _
  %s9 = ssub.s32 1, %s7
  %s10 = scalar_select 0, %s9, %s7
  %11 = sst [smem:[#allocation2]] %s0
  $region1: #{forward.1} parent=0
    #allocation3 [shape = 'u8[65536]{0}', space=vmem, size = 0x10000, scoped, tag = 'input window, operand 2, single buffered']
    #allocation4 [shape = 's32[1]{0}', space=sflag, size = 0x4, scoped, tag = 'scoped memory for forward.1']
    #allocation5 [shape = 's32[1]{0}', space=sflag, size = 0x4, scoped, tag = 'scoped memory for forward.1']
    #allocation6 [shape = 'u8[65536]{0}', space=vmem, size = 0x10000, scoped, tag = 'input window, operand 4, single buffered']
    #allocation7 [shape = 's32[1]{0}', space=sflag, size = 0x4, scoped, tag = 'scoped memory for forward.1']
    #allocation8 [shape = 'u8[4096]{0}', space=vmem, size = 0x1000, scoped, tag = 'output window, operand 0, single buffered']
    %12 = vsyncpa [#allocation4], 0
    %13 = vsyncpa [#allocation7], 0
    %14 = vsyncpa [#allocation5], 0
    // Predicated region
    $region2: #{forward.1} parent=1 // pred_check
      _
    $region3: #{forward.1} parent=1 // pred_check_branch
      %16 = sbr.rel (0) target = $region5
    $region4: #{forward.1} parent=1 // pred_region
      _
    $region5: #{forward.1} parent=1 // pred_fallthru
      _
    // Predicated region
    $region6: #{forward.1} parent=1 // pred_check
      _
    $region7: #{forward.1} parent=1 // pred_check_branch
      %18 = sbr.rel (0) target = $region9
    $region8: #{forward.1} parent=1 // pred_region
      _
    $region9: #{forward.1} parent=1 // pred_fallthru
      _
    // Predicated region
    $region10: #{forward.1} parent=1 // pred_check
      _
    $region11: #{forward.1} parent=1 // pred_check_branch
      %20 = sbr.rel (0) target = $region13
    $region12: #{forward.1} parent=1 // pred_region
      %22 = vsyncadd [#allocation4], 0
      %s23 = sshll.u32 %s2, 4
      %s24 = int_to_ptr.hbm [resolvable:$true] %s23
      %s25 = sshll.u32 [#allocation3], 4
      %s26 = int_to_ptr.vmem [resolvable:$true] %s25
      %31 = dma.hbm_to_vmem [thread:$0]  %s24, 2048, %s26, [#allocation4], 128, 128, 8
    $region13: #{forward.1} parent=1 // pred_fallthru
      _
    // Predicated region
    $region14: #{forward.1} parent=1 // pred_check
      _
    $region15: #{forward.1} parent=1 // pred_check_branch
      %33 = sbr.rel (0) target = $region17
    $region16: #{forward.1} parent=1 // pred_region
      _
    $region17: #{forward.1} parent=1 // pred_fallthru
      _
    // Predicated region
    $region18: #{forward.1} parent=1 // pred_check
      _
    $region19: #{forward.1} parent=1 // pred_check_branch
      %35 = sbr.rel (0) target = $region21
    $region20: #{forward.1} parent=1 // pred_region
      %37 = vsyncadd [#allocation7], 0
      %s38 = sshll.u32 %s4, 4
      %s39 = int_to_ptr.hbm [resolvable:$true] %s38
      %s40 = sshll.u32 [#allocation6], 4
      %s41 = int_to_ptr.vmem [resolvable:$true] %s40
      %46 = dma.hbm_to_vmem [thread:$0]  %s39, 2048, %s41, [#allocation7], 128, 128, 8
    $region21: #{forward.1} parent=1 // pred_fallthru
      _
    // Predicated region
    $region22: #{forward.1} parent=1 // pred_check
      _
    $region23: #{forward.1} parent=1 // pred_check_branch
      %48 = sbr.rel (0) target = $region25
    $region24: #{forward.1} parent=1 // pred_region
      _
    $region25: #{forward.1} parent=1 // pred_fallthru
      _
    // Predicated region
    $region26: #{forward.1} parent=1 // pred_check
      _
    $region27: #{forward.1} parent=1 // pred_check_branch
      %50 = sbr.rel (0) target = $region29
    $region28: #{forward.1} parent=1 // pred_region
      %52 = dma.done [#allocation4], 2048
    $region29: #{forward.1} parent=1 // pred_fallthru
      _
    // Predicated region
    $region30: #{forward.1} parent=1 // pred_check
      _
    $region31: #{forward.1} parent=1 // pred_check_branch
      %54 = sbr.rel (0) target = $region33
    $region32: #{forward.1} parent=1 // pred_region
      %56 = dma.done [#allocation7], 2048
    $region33: #{forward.1} parent=1 // pred_fallthru
      _
    %s57 = sld [smem:[#allocation2]]
    %v58 = vld [vmem:[#allocation6] sm:$0xff]
    %v59 = vld [vmem:[#allocation6 + $0x8] sm:$0xff]
    %v60 = vld [vmem:[#allocation6 + $0x10] sm:$0xff]
    %v61 = vld [vmem:[#allocation6 + $0x18] sm:$0xff]
    %v62 = vld [vmem:[#allocation6 + $0x20] sm:$0xff]
    %v63 = vld [vmem:[#allocation6 + $0x28] sm:$0xff]
    %v64 = vld [vmem:[#allocation6 + $0x30] sm:$0xff]
    %v65 = vld [vmem:[#allocation6 + $0x38] sm:$0xff]
    %v66 = vld [vmem:[#allocation6 + $0x40] sm:$0xff]
    %v67 = vld [vmem:[#allocation6 + $0x48] sm:$0xff]
    %v68 = vld [vmem:[#allocation6 + $0x50] sm:$0xff]
    %v69 = vld [vmem:[#allocation6 + $0x58] sm:$0xff]
    %v70 = vld [vmem:[#allocation6 + $0x60] sm:$0xff]
    %v71 = vld [vmem:[#allocation6 + $0x68] sm:$0xff]
    %v72 = vld [vmem:[#allocation6 + $0x70] sm:$0xff]
    %v73 = vld [vmem:[#allocation6 + $0x78] sm:$0xff]
    %v74 = vld [vmem:[%s5] sm:$0x1]
    %v75 = vld [vmem:[%s1] sm:$0xff]
    %v76 = vld [vmem:[#allocation3] sm:$0xff]
    %v77 = vld [vmem:[#allocation3 + $0x8] sm:$0xff]
    %v78 = vld [vmem:[#allocation3 + $0x10] sm:$0xff]
    %v79 = vld [vmem:[#allocation3 + $0x18] sm:$0xff]
    %v80 = vld [vmem:[#allocation3 + $0x20] sm:$0xff]
    %v81 = vld [vmem:[#allocation3 + $0x28] sm:$0xff]
    %v82 = vld [vmem:[#allocation3 + $0x30] sm:$0xff]
    %v83 = vld [vmem:[#allocation3 + $0x38] sm:$0xff]
    %v84 = vld [vmem:[#allocation3 + $0x40] sm:$0xff]
    %v85 = vld [vmem:[#allocation3 + $0x48] sm:$0xff]
    %v86 = vld [vmem:[#allocation3 + $0x50] sm:$0xff]
    %v87 = vld [vmem:[#allocation3 + $0x58] sm:$0xff]
    %v88 = vld [vmem:[#allocation3 + $0x60] sm:$0xff]
    %v89 = vld [vmem:[#allocation3 + $0x68] sm:$0xff]
    %v90 = vld [vmem:[#allocation3 + $0x70] sm:$0xff]
    %v91 = vld [vmem:[#allocation3 + $0x78] sm:$0xff]
    %v92 = vld [vmem:[%s3] sm:$0x1]
    %v94 = vperm.slane %v92, 0
    %96 = vmatpush.msra.mxu0 %v91
    %97 = vmatpush.msra.mxu0 %v90
    %98 = vmatpush.msra.mxu0 %v89
    %99 = vmatpush.msra.mxu0 %v88
    %100 = vmatpush.msra.mxu0 %v87
    %101 = vmatpush.msra.mxu0 %v86
    %102 = vmatpush.msra.mxu0 %v85
    %103 = vmatpush.msra.mxu0 %v84
    %104 = vmatpush.msra.mxu0 %v83
    %105 = vmatpush.msra.mxu0 %v82
    %106 = vmatpush.msra.mxu0 %v81
    %107 = vmatpush.msra.mxu0 %v80
    %108 = vmatpush.msra.mxu0 %v79
    %109 = vmatpush.msra.mxu0 %v78
    %110 = vmatpush.msra.mxu0 %v77
    %111 = vmatpush.msra.mxu0 %v76
    %112 = vmatmul.f32.gmra.mxu0 %v75
    %v113 = vpop.f32.mrf.mxu0
    %v114 = vadd.f32 %v94, %v113
    %115 = vdwg.mxu0
    %v116 = vmax.f32 %v114, 0.0
    %v118 = vperm.slane %v74, 0
    %120 = vmatpush.msra.mxu0 %v73
    %121 = vmatpush.msra.mxu0 %v72
    %122 = vmatpush.msra.mxu0 %v71
    %123 = vmatpush.msra.mxu0 %v70
    %124 = vmatpush.msra.mxu0 %v69
    %125 = vmatpush.msra.mxu0 %v68
    %126 = vmatpush.msra.mxu0 %v67
    %127 = vmatpush.msra.mxu0 %v66
    %128 = vmatpush.msra.mxu0 %v65
    %129 = vmatpush.msra.mxu0 %v64
    %130 = vmatpush.msra.mxu0 %v63
    %131 = vmatpush.msra.mxu0 %v62
    %132 = vmatpush.msra.mxu0 %v61
    %133 = vmatpush.msra.mxu0 %v60
    %134 = vmatpush.msra.mxu0 %v59
    %135 = vmatpush.msra.mxu0 %v58
    %136 = vmatmul.f32.gmra.mxu0 %v116
    %v137 = vpop.f32.mrf.mxu0
    %v138 = vadd.f32 %v118, %v137
    %139 = vdwg.mxu0
    %v140 = vmax.f32 %v138, 0.0
    %p141 = scmp.gt.s32.totalorder %s57, 0
    %s142 = scalar_select %p141, 1, 0
    %v143 = vstv %s142
    %vm144 = vcmp.eq.s32.totalorder %v143, 1
    %v145 = vsel %vm144, %v140, %v116
    %146 = vmatpush.msra.mxu0 %v73
    %147 = vmatpush.msra.mxu0 %v72
    %148 = vmatpush.msra.mxu0 %v71
    %149 = vmatpush.msra.mxu0 %v70
    %150 = vmatpush.msra.mxu0 %v69
    %151 = vmatpush.msra.mxu0 %v68
    %152 = vmatpush.msra.mxu0 %v67
    %153 = vmatpush.msra.mxu0 %v66
    %154 = vmatpush.msra.mxu0 %v65
    %155 = vmatpush.msra.mxu0 %v64
    %156 = vmatpush.msra.mxu0 %v63
    %157 = vmatpush.msra.mxu0 %v62
    %158 = vmatpush.msra.mxu0 %v61
    %159 = vmatpush.msra.mxu0 %v60
    %160 = vmatpush.msra.mxu0 %v59
    %161 = vmatpush.msra.mxu0 %v58
    %162 = vmatmul.f32.gmra.mxu0 %v145
    %v163 = vpop.f32.mrf.mxu0
    %v164 = vadd.f32 %v118, %v163
    %165 = vdwg.mxu0
    %v166 = vmax.f32 %v164, 0.0
    %p167 = scmp.gt.s32.totalorder %s57, 1
    %s168 = scalar_select %p167, 1, 0
    %v169 = vstv %s168
    %vm170 = vcmp.eq.s32.totalorder %v169, 1
    %v171 = vsel %vm170, %v166, %v145
    %172 = vmatpush.msra.mxu0 %v73
    %173 = vmatpush.msra.mxu0 %v72
    %174 = vmatpush.msra.mxu0 %v71
    %175 = vmatpush.msra.mxu0 %v70
    %176 = vmatpush.msra.mxu0 %v69
    %177 = vmatpush.msra.mxu0 %v68
    %178 = vmatpush.msra.mxu0 %v67
    %179 = vmatpush.msra.mxu0 %v66
    %180 = vmatpush.msra.mxu0 %v65
    %181 = vmatpush.msra.mxu0 %v64
    %182 = vmatpush.msra.mxu0 %v63
    %183 = vmatpush.msra.mxu0 %v62
    %184 = vmatpush.msra.mxu0 %v61
    %185 = vmatpush.msra.mxu0 %v60
    %186 = vmatpush.msra.mxu0 %v59
    %187 = vmatpush.msra.mxu0 %v58
    %188 = vmatmul.f32.gmra.mxu0 %v171
    %v189 = vpop.f32.mrf.mxu0
    %v190 = vadd.f32 %v118, %v189
    %191 = vdwg.mxu0
    %v192 = vmax.f32 %v190, 0.0
    %p193 = scmp.gt.s32.totalorder %s57, 2
    %s194 = scalar_select %p193, 1, 0
    %v195 = vstv %s194
    %vm196 = vcmp.eq.s32.totalorder %v195, 1
    %v197 = vsel %vm196, %v192, %v171
    %198 = vmatpush.msra.mxu0 %v73
    %199 = vmatpush.msra.mxu0 %v72
    %200 = vmatpush.msra.mxu0 %v71
    %201 = vmatpush.msra.mxu0 %v70
    %202 = vmatpush.msra.mxu0 %v69
    %203 = vmatpush.msra.mxu0 %v68
    %204 = vmatpush.msra.mxu0 %v67
    %205 = vmatpush.msra.mxu0 %v66
    %206 = vmatpush.msra.mxu0 %v65
    %207 = vmatpush.msra.mxu0 %v64
    %208 = vmatpush.msra.mxu0 %v63
    %209 = vmatpush.msra.mxu0 %v62
    %210 = vmatpush.msra.mxu0 %v61
    %211 = vmatpush.msra.mxu0 %v60
    %212 = vmatpush.msra.mxu0 %v59
    %213 = vmatpush.msra.mxu0 %v58
    %214 = vmatmul.f32.gmra.mxu0 %v197
    %v215 = vpop.f32.mrf.mxu0
    %v216 = vadd.f32 %v118, %v215
    %217 = vdwg.mxu0
    %218 = vst [vmem:[#allocation8] sm:$0xff] %v216
    // Predicated region
    $region34: #{forward.1} parent=1 // pred_check
      _
    $region35: #{forward.1} parent=1 // pred_check_branch
      %220 = sbr.rel (0) target = $region37
    $region36: #{forward.1} parent=1 // pred_region
      %222 = vsyncadd [#allocation5], 0
      %s224 = sshll.u32 [#allocation8], 4
      %s225 = int_to_ptr.vmem [resolvable:$true] %s224
      %s226 = sshll.u32 %s6, 4
      %s227 = int_to_ptr.hbm [resolvable:$true] %s226
      %229 = dma.vmem_to_hbm [thread:$0]  %s225, 128, %s227, [#allocation5]
    $region37: #{forward.1} parent=1 // pred_fallthru
      _
    // Predicated region
    $region38: #{forward.1} parent=1 // pred_check
      _
    $region39: #{forward.1} parent=1 // pred_check_branch
      %231 = sbr.rel (0) target = $region41
    $region40: #{forward.1} parent=1 // pred_region
      %233 = dma.done [#allocation5], 128
    $region41: #{forward.1} parent=1 // pred_fallthru
      _
    %234 = vsyncpa [#allocation4], 1
    %235 = vsyncpa [#allocation7], 1
    %236 = vsyncpa [#allocation5], 1

</llo_original>
